<compile_context>
chip_gen: v7x
topology: tpu7x:2x2x1
jax: 0.10.0
libtpu: 0.0.40
codegen_flags: <defaults>
</compile_context>

<pallas_src>
from functools import partial

import jax
import jax.numpy as jnp
from jax.experimental import pallas as pl
from jax.experimental.pallas import tpu as pltpu


# ---------------- hardware-derived knobs (safe fallbacks everywhere) ----------------

def _tpu_knobs():
    """Per-generation (vmem_limit_bytes, MXU contraction-depth cutoff)."""
    phys_vmem = 64 << 20       # conservative default == v7x per-core VMEM
    mxu_cutoff = 32            # v6e/v7x: 256-wide MXU -> tiny contractions are fill/drain
    try:
        kind = jax.devices()[0].device_kind.lower()
        if "v5" in kind:
            phys_vmem, mxu_cutoff = 128 << 20, 8   # v5e: 128x128 MXUs, no bf16 VALU
        elif "v6" in kind:
            phys_vmem = 128 << 20
    except Exception:
        pass
    try:  # belt & suspenders: never exceed what the runtime reports
        phys_vmem = min(phys_vmem, pltpu.get_tpu_info().vmem_capacity_bytes)
    except Exception:
        pass
    return phys_vmem // 2, mxu_cutoff   # leave half of physical VMEM as headroom


def _pick_tile(m, bytes_per_lane, budget_bytes, max_tile=None):
    """Largest lane-tile that divides m and whose pipelined footprint fits the budget."""
    cap = max(128, budget_bytes // max(bytes_per_lane, 1))
    if max_tile is not None:
        cap = min(cap, max_tile)
    for t in (65536, 32768, 16384, 8192, 4096, 2048, 1024, 512, 256, 128):
        if t <= cap and m % t == 0:
            return t
    return m  # single full-extent block fallback (small / oddly-shaped m)


# ----------------------------------- kernels -----------------------------------------

def _phase_conv(w_ref, x_ref, ci_count, use_mxu):
    """accT[j, m] = sum_ci W[j, ci] * X[ci, m]  (f32 accumulation).

    w_ref: (J, CI) already in its MAC dtype (bf16 on the MXU path, f32 on the VPU path,
    cast hoisted to the wrapper).  x_ref: (CI, TM) bf16.
    """
    if use_mxu:
        return jnp.dot(w_ref[...], x_ref[...], preferred_element_type=jnp.float32)
    x = x_ref[...].astype(jnp.float32)                        # (CI, TM)
    acc = jnp.zeros((w_ref.shape[0], x.shape[1]), jnp.float32)
    for ci in range(ci_count):                                # unrolled, CI is tiny
        acc = acc + w_ref[:, ci:ci + 1] * x[ci:ci + 1, :]     # (J,1)*(1,TM) -> (J,TM)
    return acc


def _fused_kernel(x_ref, w_ref, gamma_ref, beta_ref, p_ref, o_ref, *,
                  ci_count, use_mxu, eps, out_dtype):
    """Single-shot: conv -> batch stats -> BN fold (rsqrt on EUP) -> ReLU -> store."""
    acc = _phase_conv(w_ref, x_ref, ci_count, use_mxu)        # (J, M) f32
    row_sum = jnp.sum(acc, axis=1, keepdims=True)             # (J, 1)
    row_sumsq = jnp.sum(acc * acc, axis=1, keepdims=True)     # (J, 1)
    # P is the per-channel averaging matrix (1/count within a channel's s*s row group):
    # two tiny matmuls broadcast per-channel mean / E[y^2] back to every row.
    mean_j = jnp.dot(p_ref[...], row_sum, preferred_element_type=jnp.float32)
    ex2_j = jnp.dot(p_ref[...], row_sumsq, preferred_element_type=jnp.float32)
    var_j = jnp.maximum(ex2_j - mean_j * mean_j, 0.0)         # biased var (BN training)
    scale_j = gamma_ref[...] * jax.lax.rsqrt(var_j + eps)     # rsqrt -> EUP slot
    shift_j = beta_ref[...] - mean_j * scale_j
    o_ref[...] = jnp.maximum(acc * scale_j + shift_j, 0.0).astype(out_dtype)


def _stats_kernel(x_ref, w_ref, stats_ref, psum_ref, psumsq_ref, *, ci_count, use_mxu):
    """Fallback pass 1: accumulate sum / sum-of-squares of the (never materialized)
    conv output.  Per-step work is pure VPU adds into full-width scratch; the cross-lane
    reduction and the single (J, 2) store happen once on the last step."""
    i = pl.program_id(1)

    @pl.when(i == 0)
    def _init():
        psum_ref[...] = jnp.zeros_like(psum_ref)
        psumsq_ref[...] = jnp.zeros_like(psumsq_ref)

    acc = _phase_conv(w_ref, x_ref, ci_count, use_mxu)        # (J, TM) f32
    psum_ref[...] += acc
    psumsq_ref[...] += acc * acc

    @pl.when(i == pl.num_programs(1) - 1)
    def _fin():
        s1 = jnp.sum(psum_ref[...], axis=1, keepdims=True)    # (J, 1)
        s2 = jnp.sum(psumsq_ref[...], axis=1, keepdims=True)  # (J, 1)
        stats_ref[0, :, :] = jnp.concatenate([s1, s2], axis=1)  # one (J, 2) store


def _apply_kernel(x_ref, w_ref, shift_ref, o_ref, *, ci_count, use_mxu, out_dtype):
    """Fallback pass 2: recompute conv with scale-folded weights, shift, ReLU, store."""
    acc = _phase_conv(w_ref, x_ref, ci_count, use_mxu)        # (J, TM) f32
    o_ref[...] = jnp.maximum(acc + shift_ref[...], 0.0).astype(out_dtype)


# ----------------------------------- wrapper ------------------------------------------

def deconv2d_batchnorm_relu(x_nchw, weight, bias, gamma, beta, *,
                            stride, padding, eps=1e-5, out_dtype=jnp.float32,
                            force_two_pass=False, max_tile=None):
    """weight is PyTorch ConvTranspose2d layout: (C_in, C_out, K, K)."""
    N, CI, H, W = x_nchw.shape
    CI_w, CO, KH, KW = weight.shape
    assert CI_w == CI and KH == KW
    K, s, p = KH, stride, padding
    # TODO(synk): general k_size != stride or padding > 0 needs the multi-tap phase
    # decomposition with cropping; this fused fast path covers the k_size == stride,
    # padding == 0 ("learned upsample") configuration the module is instantiated with.
    assert K == s and p == 0, "fast path requires k_size == stride and padding == 0"

    HO, WO = H * s, W * s
    M = N * H * W                # input pixels (one per output phase group)
    J = CO * s * s               # output channel*phase rows

    vmem_limit, mxu_cutoff = _tpu_knobs()
    use_mxu = CI >= mxu_cutoff
    mac_dtype = jnp.bfloat16 if use_mxu else jnp.float32
    out_bytes = jnp.dtype(out_dtype).itemsize

    # ---- prologue: one transpose+cast for x, tiny weight reorder (no dilation/pad) ----
    # TODO(synk): allow_input_fusion could fold this transpose+cast into the pallas input
    # DMA; kept as a plain XLA op for lowering robustness (tiny at CI=4).
    xt = jnp.transpose(x_nchw, (1, 0, 2, 3)).reshape(CI, M).astype(jnp.bfloat16)
    # Wmat[j, ci] with j = (co*s + rh)*s + rw  ==  weight[ci, co, rh, rw]
    wmat = jnp.transpose(weight, (1, 2, 3, 0)).reshape(J, CI).astype(jnp.float32)
    del bias                     # exactly cancelled by training-mode BN mean subtraction

    cnt = jnp.float32(N * HO * WO)                            # elements per channel

    # ---------------- fused single-kernel path (everything resident in VMEM) ----------
    fused_bytes = (CI * M * 2) * 2 + (J * M * out_bytes) * 2 + (J * M * 4) * 3
    if (not force_two_pass) and fused_bytes <= vmem_limit // 2:
        group = jnp.arange(J) // (s * s)
        p_mat = (group[:, None] == group[None, :]).astype(jnp.float32) / cnt
        gamma_j = jnp.repeat(gamma.astype(jnp.float32), s * s).reshape(J, 1)
        beta_j = jnp.repeat(beta.astype(jnp.float32), s * s).reshape(J, 1)
        out_t = pl.pallas_call(
            partial(_fused_kernel, ci_count=CI, use_mxu=use_mxu,
                    eps=float(eps), out_dtype=out_dtype),
            out_shape=jax.ShapeDtypeStruct((J, M), out_dtype),
            grid=(1,),
            in_specs=[pl.BlockSpec((CI, M), lambda i: (0, 0)),
                      pl.BlockSpec((J, CI), lambda i: (0, 0)),
                      pl.BlockSpec((J, 1), lambda i: (0, 0)),
                      pl.BlockSpec((J, 1), lambda i: (0, 0)),
                      pl.BlockSpec((J, J), lambda i: (0, 0))],
            out_specs=pl.BlockSpec((J, M), lambda i: (0, 0)),
            compiler_params=pltpu.CompilerParams(
                dimension_semantics=("arbitrary",), vmem_limit_bytes=vmem_limit),
        )(xt, wmat.astype(mac_dtype), gamma_j, beta_j, p_mat)

    # ---------------- two-pass fallback (M too large for a single VMEM block) ---------
    else:
        # Largest tile that fits the double-buffered + scratch footprint.
        bytes_per_lane = (CI * 2) * 2 + (J * 4) * 2 + (J * out_bytes) * 2 + (J * 4)
        TM = _pick_tile(M, bytes_per_lane, int(vmem_limit * 0.6), max_tile)
        m_tiles = M // TM
        nsplit = 2 if (m_tiles >= 2 and m_tiles % 2 == 0) else 1
        ipc = m_tiles // nsplit

        # pass 1: per-row sum / sum-of-squares, split across TensorCores on v7x.
        stats = pl.pallas_call(
            partial(_stats_kernel, ci_count=CI, use_mxu=use_mxu),
            out_shape=jax.ShapeDtypeStruct((nsplit, J, 2), jnp.float32),
            grid=(nsplit, ipc),
            in_specs=[pl.BlockSpec((CI, TM), lambda c, i, _ipc=ipc: (0, c * _ipc + i)),
                      pl.BlockSpec((J, CI), lambda c, i: (0, 0))],
            out_specs=pl.BlockSpec((1, J, 2), lambda c, i: (c, 0, 0)),
            scratch_shapes=[pltpu.VMEM((J, TM), jnp.float32),
                            pltpu.VMEM((J, TM), jnp.float32)],
            compiler_params=pltpu.CompilerParams(
                dimension_semantics=("parallel", "arbitrary"),
                vmem_limit_bytes=vmem_limit),
        )(xt, wmat.astype(mac_dtype))

        # BN fold (tiny): combine per-core partials, aggregate the s*s phases per channel.
        # NOTE: E[y^2]-E[y]^2 can cancel when |mean| >> std; acceptable here, use shifted
        # sums for production-scale activations.
        stats_sum = stats.sum(axis=0)                          # (J, 2)
        sums = stats_sum[:, 0].reshape(CO, s * s).sum(axis=1)
        sumsq = stats_sum[:, 1].reshape(CO, s * s).sum(axis=1)
        mean = sums / cnt
        var = jnp.maximum(sumsq / cnt - mean * mean, 0.0)      # biased var (BN training)
        scale = gamma.astype(jnp.float32) * jax.lax.rsqrt(var + eps)
        shift = beta.astype(jnp.float32) - mean * scale
        scale_j = jnp.repeat(scale, s * s).reshape(J, 1)
        shift_j = jnp.repeat(shift, s * s).reshape(J, 1)
        wmat_scaled = (wmat * scale_j).astype(mac_dtype)       # fold scale into weights

        # pass 2: recompute conv, shift, ReLU; lane-dense (J, TM) stores.
        # TODO(synk): sweep pipeline_mode=pl.Buffered(3) on out_specs for very large M.
        out_t = pl.pallas_call(
            partial(_apply_kernel, ci_count=CI, use_mxu=use_mxu, out_dtype=out_dtype),
            out_shape=jax.ShapeDtypeStruct((J, M), out_dtype),
            grid=(m_tiles,),
            in_specs=[pl.BlockSpec((CI, TM), lambda i: (0, i)),
                      pl.BlockSpec((J, CI), lambda i: (0, 0)),
                      pl.BlockSpec((J, 1), lambda i: (0, 0))],
            out_specs=pl.BlockSpec((J, TM), lambda i: (0, i)),
            compiler_params=pltpu.CompilerParams(
                dimension_semantics=("parallel",), vmem_limit_bytes=vmem_limit),
        )(xt, wmat_scaled, shift_j)

    # epilogue: pixel-shuffle + channels-first in one transpose.
    # TODO(synk): an in-kernel rw-phase lane interleave could remove this HBM round-trip
    # for large shapes; kept as one XLA op for lowering robustness (tiny at these sizes).
    out = out_t.reshape(CO, s, s, N, H, W)
    out = jnp.transpose(out, (3, 0, 4, 1, 5, 2)).reshape(N, CO, HO, WO)
    return out


# ---------------------------------- reference ------------------------------------------

def ref_forward(x, weight, bias, gamma, beta, stride, padding, eps=1e-5):
    """Pure-JAX reference implementing the PyTorch module definition directly."""
    N, CI, H, W = x.shape
    CO, K = weight.shape[1], weight.shape[2]
    s, p = stride, padding
    Hfull = (H - 1) * s + K
    Wfull = (W - 1) * s + K
    y = jnp.zeros((N, CO, Hfull, Wfull), jnp.float32)
    for kh in range(K):
        for kw in range(K):
            contrib = jnp.einsum('nchw,cd->ndhw', x, weight[:, :, kh, kw])
            y = y.at[:, :, kh:kh + (H - 1) * s + 1:s,
                     kw:kw + (W - 1) * s + 1:s].add(contrib)
    HO, WO = Hfull - 2 * p, Wfull - 2 * p
    y = y[:, :, p:p + HO, p:p + WO] + bias[None, :, None, None]
    mean = y.mean(axis=(0, 2, 3), keepdims=True)
    var = ((y - mean) ** 2).mean(axis=(0, 2, 3), keepdims=True)
    yn = (y - mean) * jax.lax.rsqrt(var + eps) * gamma[None, :, None, None] \
        + beta[None, :, None, None]
    return jnp.maximum(yn, 0.0)


if __name__ == "__main__":
    # deconv2DBatchNormRelu(in_channels=4, n_filters=8, k_size=2, stride=2, padding=0)
    N, CI, H, W = 2, 4, 16, 16
    CO, K, stride, padding = 8, 2, 2, 0

    key = jax.random.PRNGKey(0)
    k1, k2, k3, k4, k5 = jax.random.split(key, 5)
    x = jax.random.normal(k1, (N, CI, H, W), jnp.float32)
    weight = jax.random.normal(k2, (CI, CO, K, K), jnp.float32) * 0.1  # ConvTranspose2d.weight
    bias = jax.random.normal(k3, (CO,), jnp.float32) * 0.1             # ConvTranspose2d.bias
    gamma = jax.random.uniform(k4, (CO,), jnp.float32, 0.5, 1.5)       # BatchNorm2d.weight
    beta = jax.random.normal(k5, (CO,), jnp.float32) * 0.1             # BatchNorm2d.bias

    # Reference on bf16-rounded input (kernel feeds x to the MAC path in bf16,
    # accumulates in f32) -> comparison is tight.
    x_r = x.astype(jnp.bfloat16).astype(jnp.float32)
    ref = ref_forward(x_r, weight, bias, gamma, beta, stride, padding)

    # Primary (fused single-kernel) path.
    fn_fused = jax.jit(partial(deconv2d_batchnorm_relu, stride=stride, padding=padding))
    out = jax.block_until_ready(fn_fused(x, weight, bias, gamma, beta))
    assert out.shape == ref.shape == (N, CO, (H - 1) * stride + K, (W - 1) * stride + K)
    max_err = float(jnp.max(jnp.abs(out - ref)))
    assert max_err < 1e-3, f"fused path max abs err {max_err}"

    # Also exercise the tiled two-pass fallback (large-M path) with multiple grid steps
    # and the 2-way stats split, to keep it verified.
    fn_tiled = jax.jit(partial(deconv2d_batchnorm_relu, stride=stride, padding=padding,
                               force_two_pass=True, max_tile=128))
    out2 = jax.block_until_ready(fn_tiled(x, weight, bias, gamma, beta))
    max_err2 = float(jnp.max(jnp.abs(out2 - ref)))
    assert max_err2 < 1e-3, f"two-pass path max abs err {max_err2}"

    print("KERNEL_OK")
</pallas_src>

<mosaic_0001>
module attributes {stable_mosaic.version = 11 : i64} {
  func.func @_fused_kernel(%arg0: i32, %arg1: memref<4x512xbf16, #tpu.memory_space<vmem>>, %arg2: memref<32x4xf32, #tpu.memory_space<vmem>>, %arg3: memref<32x1xf32, #tpu.memory_space<vmem>>, %arg4: memref<32x1xf32, #tpu.memory_space<vmem>>, %arg5: memref<32x32xf32, #tpu.memory_space<vmem>>, %arg6: memref<32x512xf32, #tpu.memory_space<vmem>>) attributes {dimension_semantics = [#tpu.dimension_semantics<arbitrary>], iteration_bounds = array<i64: 1>, scalar_prefetch = 0 : i64, scratch_operands = 0 : i64, tpu.core_type = #tpu.core_type<tc>, window_params = [{pipeline_mode = #tpu.pipeline_mode<synchronous>, transform_indices = @transform_0, window_bounds = array<i64: 4, 512>}, {pipeline_mode = #tpu.pipeline_mode<synchronous>, transform_indices = @transform_1, window_bounds = array<i64: 32, 4>}, {pipeline_mode = #tpu.pipeline_mode<synchronous>, transform_indices = @transform_2, window_bounds = array<i64: 32, 1>}, {pipeline_mode = #tpu.pipeline_mode<synchronous>, transform_indices = @transform_3, window_bounds = array<i64: 32, 1>}, {pipeline_mode = #tpu.pipeline_mode<synchronous>, transform_indices = @transform_4, window_bounds = array<i64: 32, 32>}, {pipeline_mode = #tpu.pipeline_mode<synchronous>, transform_indices = @transform_5, window_bounds = array<i64: 32, 512>}]} {
    %c0 = arith.constant 0 : index
    %c0_0 = arith.constant 0 : index
    %0 = vector.load %arg1[%c0, %c0_0] : memref<4x512xbf16, #tpu.memory_space<vmem>>, vector<4x512xbf16>
    %1 = arith.extf %0 : vector<4x512xbf16> to vector<4x512xf32>
    %cst = arith.constant 0.000000e+00 : f32
    %2 = vector.broadcast %cst : f32 to vector<32x512xf32>
    %c0_1 = arith.constant 0 : index
    %c0_2 = arith.constant 0 : index
    %3 = vector.load %arg2[%c0_1, %c0_2] : memref<32x4xf32, #tpu.memory_space<vmem>>, vector<32x1xf32>
    %4 = vector.extract_strided_slice %1 {offsets = [0, 0], sizes = [1, 512], strides = [1, 1]} : vector<4x512xf32> to vector<1x512xf32>
    %5 = vector.broadcast %3 : vector<32x1xf32> to vector<32x512xf32>
    %6 = vector.broadcast %4 : vector<1x512xf32> to vector<32x512xf32>
    %7 = arith.mulf %5, %6 : vector<32x512xf32>
    %8 = arith.addf %2, %7 : vector<32x512xf32>
    %c0_3 = arith.constant 0 : index
    %c1 = arith.constant 1 : index
    %9 = vector.load %arg2[%c0_3, %c1] : memref<32x4xf32, #tpu.memory_space<vmem>>, vector<32x1xf32>
    %10 = vector.extract_strided_slice %1 {offsets = [1, 0], sizes = [1, 512], strides = [1, 1]} : vector<4x512xf32> to vector<1x512xf32>
    %11 = vector.broadcast %9 : vector<32x1xf32> to vector<32x512xf32>
    %12 = vector.broadcast %10 : vector<1x512xf32> to vector<32x512xf32>
    %13 = arith.mulf %11, %12 : vector<32x512xf32>
    %14 = arith.addf %8, %13 : vector<32x512xf32>
    %c0_4 = arith.constant 0 : index
    %c2 = arith.constant 2 : index
    %15 = vector.load %arg2[%c0_4, %c2] : memref<32x4xf32, #tpu.memory_space<vmem>>, vector<32x1xf32>
    %16 = vector.extract_strided_slice %1 {offsets = [2, 0], sizes = [1, 512], strides = [1, 1]} : vector<4x512xf32> to vector<1x512xf32>
    %17 = vector.broadcast %15 : vector<32x1xf32> to vector<32x512xf32>
    %18 = vector.broadcast %16 : vector<1x512xf32> to vector<32x512xf32>
    %19 = arith.mulf %17, %18 : vector<32x512xf32>
    %20 = arith.addf %14, %19 : vector<32x512xf32>
    %c0_5 = arith.constant 0 : index
    %c3 = arith.constant 3 : index
    %21 = vector.load %arg2[%c0_5, %c3] : memref<32x4xf32, #tpu.memory_space<vmem>>, vector<32x1xf32>
    %22 = vector.extract_strided_slice %1 {offsets = [3, 0], sizes = [1, 512], strides = [1, 1]} : vector<4x512xf32> to vector<1x512xf32>
    %23 = vector.broadcast %21 : vector<32x1xf32> to vector<32x512xf32>
    %24 = vector.broadcast %22 : vector<1x512xf32> to vector<32x512xf32>
    %25 = arith.mulf %23, %24 : vector<32x512xf32>
    %26 = arith.addf %20, %25 : vector<32x512xf32>
    %cst_6 = arith.constant dense<0.000000e+00> : vector<32xf32>
    %27 = vector.multi_reduction <add>, %26, %cst_6 [1] : vector<32x512xf32> to vector<32xf32>
    %28 = vector.shape_cast %27 : vector<32xf32> to vector<32x1xf32>
    %29 = arith.mulf %26, %26 : vector<32x512xf32>
    %cst_7 = arith.constant dense<0.000000e+00> : vector<32xf32>
    %30 = vector.multi_reduction <add>, %29, %cst_7 [1] : vector<32x512xf32> to vector<32xf32>
    %31 = vector.shape_cast %30 : vector<32xf32> to vector<32x1xf32>
    %c0_8 = arith.constant 0 : index
    %c0_9 = arith.constant 0 : index
    %32 = vector.load %arg5[%c0_8, %c0_9] : memref<32x32xf32, #tpu.memory_space<vmem>>, vector<32x32xf32>
    %cst_10 = arith.constant dense<0.000000e+00> : vector<32x1xf32>
    %33 = tpu.matmul %32, %28, %cst_10 {dimension_numbers = #tpu.dot_dimension_numbers<[1], [0], [0], [1], [0, 0, 1, 1], [], []>} : vector<32x32xf32>, vector<32x1xf32>, vector<32x1xf32> -> vector<32x1xf32>
    %c0_11 = arith.constant 0 : index
    %c0_12 = arith.constant 0 : index
    %34 = vector.load %arg5[%c0_11, %c0_12] : memref<32x32xf32, #tpu.memory_space<vmem>>, vector<32x32xf32>
    %cst_13 = arith.constant dense<0.000000e+00> : vector<32x1xf32>
    %35 = tpu.matmul %34, %31, %cst_13 {dimension_numbers = #tpu.dot_dimension_numbers<[1], [0], [0], [1], [0, 0, 1, 1], [], []>} : vector<32x32xf32>, vector<32x1xf32>, vector<32x1xf32> -> vector<32x1xf32>
    %36 = arith.mulf %33, %33 : vector<32x1xf32>
    %37 = arith.subf %35, %36 : vector<32x1xf32>
    %cst_14 = arith.constant 0.000000e+00 : f32
    %38 = vector.broadcast %cst_14 : f32 to vector<32x1xf32>
    %39 = arith.maximumf %37, %38 : vector<32x1xf32>
    %c0_15 = arith.constant 0 : index
    %c0_16 = arith.constant 0 : index
    %40 = vector.load %arg3[%c0_15, %c0_16] : memref<32x1xf32, #tpu.memory_space<vmem>>, vector<32x1xf32>
    %cst_17 = arith.constant 9.99999974E-6 : f32
    %41 = vector.broadcast %cst_17 : f32 to vector<32x1xf32>
    %42 = arith.addf %39, %41 : vector<32x1xf32>
    %43 = math.rsqrt %42 : vector<32x1xf32>
    %44 = arith.mulf %40, %43 : vector<32x1xf32>
    %c0_18 = arith.constant 0 : index
    %c0_19 = arith.constant 0 : index
    %45 = vector.load %arg4[%c0_18, %c0_19] : memref<32x1xf32, #tpu.memory_space<vmem>>, vector<32x1xf32>
    %46 = arith.mulf %33, %44 : vector<32x1xf32>
    %47 = arith.subf %45, %46 : vector<32x1xf32>
    %48 = vector.broadcast %44 : vector<32x1xf32> to vector<32x512xf32>
    %49 = arith.mulf %26, %48 : vector<32x512xf32>
    %50 = vector.broadcast %47 : vector<32x1xf32> to vector<32x512xf32>
    %51 = arith.addf %49, %50 : vector<32x512xf32>
    %cst_20 = arith.constant 0.000000e+00 : f32
    %52 = vector.broadcast %cst_20 : f32 to vector<32x512xf32>
    %53 = arith.maximumf %51, %52 : vector<32x512xf32>
    %c0_21 = arith.constant 0 : index
    %c0_22 = arith.constant 0 : index
    %54 = vector.load %arg6[%c0_21, %c0_22] : memref<32x512xf32, #tpu.memory_space<vmem>>, vector<32x512xf32>
    tpu.vector_store %arg6[%c0_21, %c0_22], %53 {strides = array<i32>} : memref<32x512xf32, #tpu.memory_space<vmem>>, vector<32x512xf32>,
    return
  }
  func.func @transform_0(%arg0: i32) -> (i32, i32) {
    %c0_i32 = arith.constant 0 : i32
    %c0_i32_0 = arith.constant 0 : i32
    %c0_i32_1 = arith.constant 0 : i32
    return %c0_i32, %c0_i32_0 : i32, i32
  }
  func.func @transform_1(%arg0: i32) -> (i32, i32) {
    %c0_i32 = arith.constant 0 : i32
    %c0_i32_0 = arith.constant 0 : i32
    %c0_i32_1 = arith.constant 0 : i32
    return %c0_i32, %c0_i32_0 : i32, i32
  }
  func.func @transform_2(%arg0: i32) -> (i32, i32) {
    %c0_i32 = arith.constant 0 : i32
    %c0_i32_0 = arith.constant 0 : i32
    %c0_i32_1 = arith.constant 0 : i32
    return %c0_i32, %c0_i32_0 : i32, i32
  }
  func.func @transform_3(%arg0: i32) -> (i32, i32) {
    %c0_i32 = arith.constant 0 : i32
    %c0_i32_0 = arith.constant 0 : i32
    %c0_i32_1 = arith.constant 0 : i32
    return %c0_i32, %c0_i32_0 : i32, i32
  }
  func.func @transform_4(%arg0: i32) -> (i32, i32) {
    %c0_i32 = arith.constant 0 : i32
    %c0_i32_0 = arith.constant 0 : i32
    %c0_i32_1 = arith.constant 0 : i32
    return %c0_i32, %c0_i32_0 : i32, i32
  }
  func.func @transform_5(%arg0: i32) -> (i32, i32) {
    %c0_i32 = arith.constant 0 : i32
    %c0_i32_0 = arith.constant 0 : i32
    %c0_i32_1 = arith.constant 0 : i32
    return %c0_i32, %c0_i32_0 : i32, i32
  }
}

</mosaic_0001>

<llo_original>
// kernel: deconv2d_batchnorm_relu.1
$region0: #{deconv2d_batchnorm_relu.1}
  #allocation0 [shape = 'u32[]', space=smem, size = 0x4, offset = 0x4, fixed_abs, tag = 'smem constant byte address 0x4 - core index']
  #allocation1 [shape = 'u32[144,128]{1,0:T(1,128)}', space=vmem, size = 0x12000, scoped, tag = 'internal scratch']
  %s0 = inlined_call_operand.vmem [shape: bf16[4,512], index: 0, kind: input, shape index: {}]
  %s1 = inlined_call_operand.vmem [shape: f32[32,4], index: 1, kind: input, shape index: {}]
  %s2 = inlined_call_operand.vmem [shape: f32[32,1], index: 2, kind: input, shape index: {}]
  %s3 = inlined_call_operand.vmem [shape: f32[32,1], index: 3, kind: input, shape index: {}]
  %s4 = inlined_call_operand.vmem [shape: f32[32,32], index: 4, kind: input, shape index: {}]
  %s5 = inlined_call_operand.vmem [shape: f32[32,512], index: 5, kind: output, shape index: {}]
  %s6 = sld [smem:[#allocation0]]
  $region30: #{deconv2d_batchnorm_relu.1} parent=0
    _
  %s8 = ssub.s32 1, %s6
  %s9 = scalar_select 0, %s8, %s6
  // Predicated region
  $region2: #{deconv2d_batchnorm_relu.1} parent=0 // pred_check
    _
  $region3: #{deconv2d_batchnorm_relu.1} parent=0 // pred_check_branch
    %11 = sbr.rel (0) target = $region5
  $region4: #{deconv2d_batchnorm_relu.1} parent=0 // pred_region
    _
  $region5: #{deconv2d_batchnorm_relu.1} parent=0 // pred_fallthru
    _
  // Predicated region
  $region6: #{deconv2d_batchnorm_relu.1} parent=0 // pred_check
    _
  $region7: #{deconv2d_batchnorm_relu.1} parent=0 // pred_check_branch
    %13 = sbr.rel (0) target = $region9
  $region8: #{deconv2d_batchnorm_relu.1} parent=0 // pred_region
    _
  $region9: #{deconv2d_batchnorm_relu.1} parent=0 // pred_fallthru
    _
  // Predicated region
  $region10: #{deconv2d_batchnorm_relu.1} parent=0 // pred_check
    _
  $region11: #{deconv2d_batchnorm_relu.1} parent=0 // pred_check_branch
    %15 = sbr.rel (0) target = $region13
  $region12: #{deconv2d_batchnorm_relu.1} parent=0 // pred_region
    _
  $region13: #{deconv2d_batchnorm_relu.1} parent=0 // pred_fallthru
    _
  // Predicated region
  $region14: #{deconv2d_batchnorm_relu.1} parent=0 // pred_check
    _
  $region15: #{deconv2d_batchnorm_relu.1} parent=0 // pred_check_branch
    %17 = sbr.rel (0) target = $region17
  $region16: #{deconv2d_batchnorm_relu.1} parent=0 // pred_region
    _
  $region17: #{deconv2d_batchnorm_relu.1} parent=0 // pred_fallthru
    _
  // Predicated region
  $region18: #{deconv2d_batchnorm_relu.1} parent=0 // pred_check
    _
  $region19: #{deconv2d_batchnorm_relu.1} parent=0 // pred_check_branch
    %19 = sbr.rel (0) target = $region21
  $region20: #{deconv2d_batchnorm_relu.1} parent=0 // pred_region
    _
  $region21: #{deconv2d_batchnorm_relu.1} parent=0 // pred_fallthru
    _
  %v20 = vld [vmem:[%s0] sm:$0xff]
  %v21 = vunpack.c.l.bf16 %v20
  %v22 = vunpack.c.h.bf16 %v20
  %v23 = vld [vmem:[%s1] sm:$0xff]
  %v24 = vld [vmem:[%s1 + $0x8] sm:$0xff]
  %v25 = vld [vmem:[%s1 + $0x10] sm:$0xff]
  %v26 = vld [vmem:[%s1 + $0x18] sm:$0xff]
  %28 = vset.pattern.permute.xlu0 0
  %29 = vperm.xlu0 %28, %v23
  %v30 = vpop.permute.xlu0 %29
  %33 = vset.pattern.permute.xlu0 0
  %34 = vperm.xlu0 %33, %v24
  %v35 = vpop.permute.xlu0 %34
  %38 = vset.pattern.permute.xlu0 0
  %39 = vperm.xlu0 %38, %v25
  %v40 = vpop.permute.xlu0 %39
  %43 = vset.pattern.permute.xlu0 0
  %44 = vperm.xlu0 %43, %v26
  %v45 = vpop.permute.xlu0 %44
  %v49 = vlaneseq
  %v50 = vshrl.u32 %v49, 7
  %v51 = vsub.s32 0, %v50
  %v52 = vrot.slane %v21, %v51
  %v53 = vlaneseq
  %v54 = vshrl.u32 %v53, 7
  %v55 = vsub.s32 4, %v54
  %v56 = vrot.slane %v21, %v55
  %v57 = vlaneseq
  %v58 = vshrl.u32 %v57, 7
  %v59 = vsub.s32 0, %v58
  %v60 = vrot.slane %v22, %v59
  %v61 = vlaneseq
  %v62 = vshrl.u32 %v61, 7
  %v63 = vsub.s32 4, %v62
  %v64 = vrot.slane %v22, %v63
  %v69 = vlaneseq
  %v70 = vshrl.u32 %v69, 7
  %v71 = vsub.s32 0, %v70
  %v72 = vrot.slane %v52, %v71
  %v73 = vlaneseq
  %v74 = vshrl.u32 %v73, 7
  %v75 = vsub.s32 0, %v74
  %v76 = vrot.slane %v56, %v75
  %v77 = vlaneseq
  %v78 = vshrl.u32 %v77, 7
  %v79 = vsub.s32 0, %v78
  %v80 = vrot.slane %v60, %v79
  %v81 = vlaneseq
  %v82 = vshrl.u32 %v81, 7
  %v83 = vsub.s32 0, %v82
  %v84 = vrot.slane %v64, %v83
  %v85 = vmul.f32 %v30, %v72
  %v86 = vmul.f32 %v30, %v76
  %v87 = vmul.f32 %v30, %v80
  %v88 = vmul.f32 %v30, %v84
  %v89 = vmul.f32 %v35, %v72
  %v90 = vmul.f32 %v35, %v76
  %v91 = vmul.f32 %v35, %v80
  %v92 = vmul.f32 %v35, %v84
  %v93 = vmul.f32 %v40, %v72
  %v94 = vmul.f32 %v40, %v76
  %v95 = vmul.f32 %v40, %v80
  %v96 = vmul.f32 %v40, %v84
  %v97 = vmul.f32 %v45, %v72
  %v98 = vmul.f32 %v45, %v76
  %v99 = vmul.f32 %v45, %v80
  %v100 = vmul.f32 %v45, %v84
  %v101 = vadd.f32 %v85, 0.0
  %v102 = vadd.f32 %v86, 0.0
  %v103 = vadd.f32 %v87, 0.0
  %v104 = vadd.f32 %v88, 0.0
  %v105 = vadd.f32 %v89, 0.0
  %v106 = vadd.f32 %v90, 0.0
  %v107 = vadd.f32 %v91, 0.0
  %v108 = vadd.f32 %v92, 0.0
  %v109 = vadd.f32 %v93, 0.0
  %v110 = vadd.f32 %v94, 0.0
  %v111 = vadd.f32 %v95, 0.0
  %v112 = vadd.f32 %v96, 0.0
  %v113 = vadd.f32 %v97, 0.0
  %v114 = vadd.f32 %v98, 0.0
  %v115 = vadd.f32 %v99, 0.0
  %v116 = vadd.f32 %v100, 0.0
  %117 = vset.pattern.permute.xlu0 1
  %118 = vperm.xlu0 %117, %v23
  %v119 = vpop.permute.xlu0 %118
  %121 = vset.pattern.permute.xlu0 1
  %122 = vperm.xlu0 %121, %v24
  %v123 = vpop.permute.xlu0 %122
  %125 = vset.pattern.permute.xlu0 1
  %126 = vperm.xlu0 %125, %v25
  %v127 = vpop.permute.xlu0 %126
  %129 = vset.pattern.permute.xlu0 1
  %130 = vperm.xlu0 %129, %v26
  %v131 = vpop.permute.xlu0 %130
  %v133 = vlaneseq
  %v134 = vshrl.u32 %v133, 7
  %v135 = vsub.s32 1, %v134
  %v136 = vrot.slane %v21, %v135
  %v137 = vlaneseq
  %v138 = vshrl.u32 %v137, 7
  %v139 = vsub.s32 5, %v138
  %v140 = vrot.slane %v21, %v139
  %v141 = vlaneseq
  %v142 = vshrl.u32 %v141, 7
  %v143 = vsub.s32 1, %v142
  %v144 = vrot.slane %v22, %v143
  %v145 = vlaneseq
  %v146 = vshrl.u32 %v145, 7
  %v147 = vsub.s32 5, %v146
  %v148 = vrot.slane %v22, %v147
  %v153 = vlaneseq
  %v154 = vshrl.u32 %v153, 7
  %v155 = vsub.s32 1, %v154
  %v156 = vrot.slane %v136, %v155
  %v157 = vlaneseq
  %v158 = vshrl.u32 %v157, 7
  %v159 = vsub.s32 1, %v158
  %v160 = vrot.slane %v140, %v159
  %v161 = vlaneseq
  %v162 = vshrl.u32 %v161, 7
  %v163 = vsub.s32 1, %v162
  %v164 = vrot.slane %v144, %v163
  %v165 = vlaneseq
  %v166 = vshrl.u32 %v165, 7
  %v167 = vsub.s32 1, %v166
  %v168 = vrot.slane %v148, %v167
  %v169 = vmul.f32 %v119, %v156
  %v170 = vmul.f32 %v119, %v160
  %v171 = vmul.f32 %v119, %v164
  %v172 = vmul.f32 %v119, %v168
  %v173 = vmul.f32 %v123, %v156
  %v174 = vmul.f32 %v123, %v160
  %v175 = vmul.f32 %v123, %v164
  %v176 = vmul.f32 %v123, %v168
  %v177 = vmul.f32 %v127, %v156
  %v178 = vmul.f32 %v127, %v160
  %v179 = vmul.f32 %v127, %v164
  %v180 = vmul.f32 %v127, %v168
  %v181 = vmul.f32 %v131, %v156
  %v182 = vmul.f32 %v131, %v160
  %v183 = vmul.f32 %v131, %v164
  %v184 = vmul.f32 %v131, %v168
  %v185 = vadd.f32 %v101, %v169
  %v186 = vadd.f32 %v102, %v170
  %v187 = vadd.f32 %v103, %v171
  %v188 = vadd.f32 %v104, %v172
  %v189 = vadd.f32 %v105, %v173
  %v190 = vadd.f32 %v106, %v174
  %v191 = vadd.f32 %v107, %v175
  %v192 = vadd.f32 %v108, %v176
  %v193 = vadd.f32 %v109, %v177
  %v194 = vadd.f32 %v110, %v178
  %v195 = vadd.f32 %v111, %v179
  %v196 = vadd.f32 %v112, %v180
  %v197 = vadd.f32 %v113, %v181
  %v198 = vadd.f32 %v114, %v182
  %v199 = vadd.f32 %v115, %v183
  %v200 = vadd.f32 %v116, %v184
  %201 = vset.pattern.permute.xlu0 2
  %202 = vperm.xlu0 %201, %v23
  %v203 = vpop.permute.xlu0 %202
  %205 = vset.pattern.permute.xlu0 2
  %206 = vperm.xlu0 %205, %v24
  %v207 = vpop.permute.xlu0 %206
  %209 = vset.pattern.permute.xlu0 2
  %210 = vperm.xlu0 %209, %v25
  %v211 = vpop.permute.xlu0 %210
  %213 = vset.pattern.permute.xlu0 2
  %214 = vperm.xlu0 %213, %v26
  %v215 = vpop.permute.xlu0 %214
  %v217 = vlaneseq
  %v218 = vshrl.u32 %v217, 7
  %v219 = vsub.s32 2, %v218
  %v220 = vrot.slane %v21, %v219
  %v221 = vlaneseq
  %v222 = vshrl.u32 %v221, 7
  %v223 = vsub.s32 6, %v222
  %v224 = vrot.slane %v21, %v223
  %v225 = vlaneseq
  %v226 = vshrl.u32 %v225, 7
  %v227 = vsub.s32 2, %v226
  %v228 = vrot.slane %v22, %v227
  %v229 = vlaneseq
  %v230 = vshrl.u32 %v229, 7
  %v231 = vsub.s32 6, %v230
  %v232 = vrot.slane %v22, %v231
  %v237 = vlaneseq
  %v238 = vshrl.u32 %v237, 7
  %v239 = vsub.s32 2, %v238
  %v240 = vrot.slane %v220, %v239
  %v241 = vlaneseq
  %v242 = vshrl.u32 %v241, 7
  %v243 = vsub.s32 2, %v242
  %v244 = vrot.slane %v224, %v243
  %v245 = vlaneseq
  %v246 = vshrl.u32 %v245, 7
  %v247 = vsub.s32 2, %v246
  %v248 = vrot.slane %v228, %v247
  %v249 = vlaneseq
  %v250 = vshrl.u32 %v249, 7
  %v251 = vsub.s32 2, %v250
  %v252 = vrot.slane %v232, %v251
  %v253 = vmul.f32 %v203, %v240
  %v254 = vmul.f32 %v203, %v244
  %v255 = vmul.f32 %v203, %v248
  %v256 = vmul.f32 %v203, %v252
  %v257 = vmul.f32 %v207, %v240
  %v258 = vmul.f32 %v207, %v244
  %v259 = vmul.f32 %v207, %v248
  %v260 = vmul.f32 %v207, %v252
  %v261 = vmul.f32 %v211, %v240
  %v262 = vmul.f32 %v211, %v244
  %v263 = vmul.f32 %v211, %v248
  %v264 = vmul.f32 %v211, %v252
  %v265 = vmul.f32 %v215, %v240
  %v266 = vmul.f32 %v215, %v244
  %v267 = vmul.f32 %v215, %v248
  %v268 = vmul.f32 %v215, %v252
  %v269 = vadd.f32 %v185, %v253
  %v270 = vadd.f32 %v186, %v254
  %v271 = vadd.f32 %v187, %v255
  %v272 = vadd.f32 %v188, %v256
  %v273 = vadd.f32 %v189, %v257
  %v274 = vadd.f32 %v190, %v258
  %v275 = vadd.f32 %v191, %v259
  %v276 = vadd.f32 %v192, %v260
  %v277 = vadd.f32 %v193, %v261
  %v278 = vadd.f32 %v194, %v262
  %v279 = vadd.f32 %v195, %v263
  %v280 = vadd.f32 %v196, %v264
  %v281 = vadd.f32 %v197, %v265
  %v282 = vadd.f32 %v198, %v266
  %v283 = vadd.f32 %v199, %v267
  %v284 = vadd.f32 %v200, %v268
  %285 = vset.pattern.permute.xlu0 3
  %286 = vperm.xlu0 %285, %v23
  %v287 = vpop.permute.xlu0 %286
  %289 = vset.pattern.permute.xlu0 3
  %290 = vperm.xlu0 %289, %v24
  %v291 = vpop.permute.xlu0 %290
  %293 = vset.pattern.permute.xlu0 3
  %294 = vperm.xlu0 %293, %v25
  %v295 = vpop.permute.xlu0 %294
  %297 = vset.pattern.permute.xlu0 3
  %298 = vperm.xlu0 %297, %v26
  %v299 = vpop.permute.xlu0 %298
  %v301 = vlaneseq
  %v302 = vshrl.u32 %v301, 7
  %v303 = vsub.s32 3, %v302
  %v304 = vrot.slane %v21, %v303
  %v305 = vlaneseq
  %v306 = vshrl.u32 %v305, 7
  %v307 = vsub.s32 7, %v306
  %v308 = vrot.slane %v21, %v307
  %v309 = vlaneseq
  %v310 = vshrl.u32 %v309, 7
  %v311 = vsub.s32 3, %v310
  %v312 = vrot.slane %v22, %v311
  %v313 = vlaneseq
  %v314 = vshrl.u32 %v313, 7
  %v315 = vsub.s32 7, %v314
  %v316 = vrot.slane %v22, %v315
  %v321 = vlaneseq
  %v322 = vshrl.u32 %v321, 7
  %v323 = vsub.s32 3, %v322
  %v324 = vrot.slane %v304, %v323
  %v325 = vlaneseq
  %v326 = vshrl.u32 %v325, 7
  %v327 = vsub.s32 3, %v326
  %v328 = vrot.slane %v308, %v327
  %v329 = vlaneseq
  %v330 = vshrl.u32 %v329, 7
  %v331 = vsub.s32 3, %v330
  %v332 = vrot.slane %v312, %v331
  %v333 = vlaneseq
  %v334 = vshrl.u32 %v333, 7
  %v335 = vsub.s32 3, %v334
  %v336 = vrot.slane %v316, %v335
  %v337 = vmul.f32 %v287, %v324
  %v338 = vmul.f32 %v287, %v328
  %v339 = vmul.f32 %v287, %v332
  %v340 = vmul.f32 %v287, %v336
  %v341 = vmul.f32 %v291, %v324
  %v342 = vmul.f32 %v291, %v328
  %v343 = vmul.f32 %v291, %v332
  %v344 = vmul.f32 %v291, %v336
  %v345 = vmul.f32 %v295, %v324
  %v346 = vmul.f32 %v295, %v328
  %v347 = vmul.f32 %v295, %v332
  %v348 = vmul.f32 %v295, %v336
  %v349 = vmul.f32 %v299, %v324
  %v350 = vmul.f32 %v299, %v328
  %v351 = vmul.f32 %v299, %v332
  %v352 = vmul.f32 %v299, %v336
  %v353 = vadd.f32 %v269, %v337
  %v354 = vadd.f32 %v270, %v338
  %v355 = vadd.f32 %v271, %v339
  %v356 = vadd.f32 %v272, %v340
  %v357 = vadd.f32 %v273, %v341
  %v358 = vadd.f32 %v274, %v342
  %v359 = vadd.f32 %v275, %v343
  %v360 = vadd.f32 %v276, %v344
  %v361 = vadd.f32 %v277, %v345
  %v362 = vadd.f32 %v278, %v346
  %v363 = vadd.f32 %v279, %v347
  %v364 = vadd.f32 %v280, %v348
  %v365 = vadd.f32 %v281, %v349
  %v366 = vadd.f32 %v282, %v350
  %v367 = vadd.f32 %v283, %v351
  %v368 = vadd.f32 %v284, %v352
  %v369 = vadd.f32 %v353, %v354
  %v370 = vadd.f32 %v369, %v355
  %v371 = vadd.f32 %v370, %v356
  %372 = vadd.xlane.f32.xlu0 %v371
  %v373 = vpop.xlane.xlu0 %372
  %v374 = vadd.f32 %v357, %v358
  %v375 = vadd.f32 %v374, %v359
  %v376 = vadd.f32 %v375, %v360
  %377 = vadd.xlane.f32.xlu0 %v376
  %v378 = vpop.xlane.xlu0 %377
  %v379 = vadd.f32 %v361, %v362
  %v380 = vadd.f32 %v379, %v363
  %v381 = vadd.f32 %v380, %v364
  %382 = vadd.xlane.f32.xlu0 %v381
  %v383 = vpop.xlane.xlu0 %382
  %v384 = vadd.f32 %v365, %v366
  %v385 = vadd.f32 %v384, %v367
  %v386 = vadd.f32 %v385, %v368
  %387 = vadd.xlane.f32.xlu0 %v386
  %v388 = vpop.xlane.xlu0 %387
  %v389 = vmul.f32 %v353, %v353
  %v390 = vmul.f32 %v354, %v354
  %v391 = vmul.f32 %v355, %v355
  %v392 = vmul.f32 %v356, %v356
  %v393 = vmul.f32 %v357, %v357
  %v394 = vmul.f32 %v358, %v358
  %v395 = vmul.f32 %v359, %v359
  %v396 = vmul.f32 %v360, %v360
  %v397 = vmul.f32 %v361, %v361
  %v398 = vmul.f32 %v362, %v362
  %v399 = vmul.f32 %v363, %v363
  %v400 = vmul.f32 %v364, %v364
  %v401 = vmul.f32 %v365, %v365
  %v402 = vmul.f32 %v366, %v366
  %v403 = vmul.f32 %v367, %v367
  %v404 = vmul.f32 %v368, %v368
  %v405 = vadd.f32 %v389, %v390
  %v406 = vadd.f32 %v405, %v391
  %v407 = vadd.f32 %v406, %v392
  %408 = vadd.xlane.f32.xlu0 %v407
  %v409 = vpop.xlane.xlu0 %408
  %v410 = vadd.f32 %v393, %v394
  %v411 = vadd.f32 %v410, %v395
  %v412 = vadd.f32 %v411, %v396
  %413 = vadd.xlane.f32.xlu0 %v412
  %v414 = vpop.xlane.xlu0 %413
  %v415 = vadd.f32 %v397, %v398
  %v416 = vadd.f32 %v415, %v399
  %v417 = vadd.f32 %v416, %v400
  %418 = vadd.xlane.f32.xlu0 %v417
  %v419 = vpop.xlane.xlu0 %418
  %v420 = vadd.f32 %v401, %v402
  %v421 = vadd.f32 %v420, %v403
  %v422 = vadd.f32 %v421, %v404
  %423 = vadd.xlane.f32.xlu0 %v422
  %v424 = vpop.xlane.xlu0 %423
  %v425 = vld [vmem:[%s4] sm:$0xff]
  %v426 = vld [vmem:[%s4 + $0x8] sm:$0xff]
  %v427 = vld [vmem:[%s4 + $0x10] sm:$0xff]
  %v428 = vld [vmem:[%s4 + $0x18] sm:$0xff]
  %vm429 = vcmask 261120
  %v431 = vsel %vm429, %v425, 0
  %v434 = vsel %vm429, %v426, 0
  %v437 = vsel %vm429, %v427, 0
  %v440 = vsel %vm429, %v428, 0
  %442 = vmatprep.subr.mxu0 0.0
  %443 = vmatpush1.msra.mxu0 %v373
  %444 = vmatprep.subr.mxu0 0.0
  %445 = vmatpush1.msra.mxu0 %v378
  %446 = vmatprep.subr.mxu0 0.0
  %447 = vmatpush1.msra.mxu0 %v383
  %448 = vmatprep.subr.mxu0 0.0
  %449 = vmatpush1.msra.mxu0 %v388
  %450 = vmatprep.subr.mxu0 0.0
  %451 = vmatpush1.msra.mxu0 0.0
  %452 = vmatprep.subr.mxu0 0.0
  %453 = vmatpush1.msra.mxu0 0.0
  %454 = vmatprep.subr.mxu0 0.0
  %455 = vmatpush1.msra.mxu0 0.0
  %456 = vmatprep.subr.mxu0 0.0
  %457 = vmatpush1.msra.mxu0 0.0
  %458 = vmatprep.subr.mxu0 0.0
  %459 = vmatpush1.msra.mxu0 0.0
  %460 = vmatprep.subr.mxu0 0.0
  %461 = vmatpush1.msra.mxu0 0.0
  %462 = vmatprep.subr.mxu0 0.0
  %463 = vmatpush1.msra.mxu0 0.0
  %464 = vmatprep.subr.mxu0 0.0
  %465 = vmatpush1.msra.mxu0 0.0
  %466 = vmatprep.subr.mxu0 0.0
  %467 = vmatpush1.msra.mxu0 0.0
  %468 = vmatprep.subr.mxu0 0.0
  %469 = vmatpush1.msra.mxu0 0.0
  %470 = vmatprep.subr.mxu0 0.0
  %471 = vmatpush1.msra.mxu0 0.0
  %472 = vmatprep.subr.mxu0 0.0
  %473 = vmatpush1.msra.mxu0 0.0
  %474 = vmatprep.subr.mxu0 0.0
  %475 = vmatpush1.msra.mxu0 0.0
  %476 = vmatprep.subr.mxu0 0.0
  %477 = vmatpush1.msra.mxu0 0.0
  %478 = vmatprep.subr.mxu0 0.0
  %479 = vmatpush1.msra.mxu0 0.0
  %480 = vmatprep.subr.mxu0 0.0
  %481 = vmatpush1.msra.mxu0 0.0
  %482 = vmatprep.subr.mxu0 0.0
  %483 = vmatpush1.msra.mxu0 0.0
  %484 = vmatprep.subr.mxu0 0.0
  %485 = vmatpush1.msra.mxu0 0.0
  %486 = vmatprep.subr.mxu0 0.0
  %487 = vmatpush1.msra.mxu0 0.0
  %488 = vmatprep.subr.mxu0 0.0
  %489 = vmatpush1.msra.mxu0 0.0
  %490 = vmatprep.subr.mxu0 0.0
  %491 = vmatpush1.msra.mxu0 0.0
  %492 = vmatprep.subr.mxu0 0.0
  %493 = vmatpush1.msra.mxu0 0.0
  %494 = vmatprep.subr.mxu0 0.0
  %495 = vmatpush1.msra.mxu0 0.0
  %496 = vmatprep.subr.mxu0 0.0
  %497 = vmatpush1.msra.mxu0 0.0
  %498 = vmatprep.subr.mxu0 0.0
  %499 = vmatpush1.msra.mxu0 0.0
  %500 = vmatprep.subr.mxu0 0.0
  %501 = vmatpush1.msra.mxu0 0.0
  %502 = vmatprep.subr.mxu0 0.0
  %503 = vmatpush1.msra.mxu0 0.0
  %504 = vmatprep.subr.mxu0 0.0
  %505 = vmatpush1.msra.mxu0 0.0
  %506 = vmatprep.mubr.f32.mxu0 0.0
  %507 = vmatmul.mubr.f32.gmra.mrb[0].mxu0 %v431
  %v508 = vpop.f32.mrb[0].mxu0
  %v509 = vadd.f32 0.0, %v508
  %v510 = vpop.f32.mrb[0].mxu0
  %511 = vmatprep.mubr.f32.mxu0 0.0
  %512 = vmatmul.mubr.f32.gmra.mrb[0].mxu0 %v434
  %v513 = vpop.f32.mrb[0].mxu0
  %v514 = vadd.f32 0.0, %v513
  %v515 = vpop.f32.mrb[0].mxu0
  %516 = vmatprep.mubr.f32.mxu0 0.0
  %517 = vmatmul.mubr.f32.gmra.mrb[0].mxu0 %v437
  %v518 = vpop.f32.mrb[0].mxu0
  %v519 = vadd.f32 0.0, %v518
  %v520 = vpop.f32.mrb[0].mxu0
  %521 = vmatprep.mubr.f32.mxu0 0.0
  %522 = vmatmul.mubr.f32.gmra.mrb[0].mxu0 %v440
  %v523 = vpop.f32.mrb[0].mxu0
  %v524 = vadd.f32 0.0, %v523
  %v525 = vpop.f32.mrb[0].mxu0
  %526 = vdwg.mxu0
  %527 = vmatprep.subr.mxu0 0.0
  %528 = vmatpush1.msra.mxu0 %v409
  %529 = vmatprep.subr.mxu0 0.0
  %530 = vmatpush1.msra.mxu0 %v414
  %531 = vmatprep.subr.mxu0 0.0
  %532 = vmatpush1.msra.mxu0 %v419
  %533 = vmatprep.subr.mxu0 0.0
  %534 = vmatpush1.msra.mxu0 %v424
  %535 = vmatprep.subr.mxu0 0.0
  %536 = vmatpush1.msra.mxu0 0.0
  %537 = vmatprep.subr.mxu0 0.0
  %538 = vmatpush1.msra.mxu0 0.0
  %539 = vmatprep.subr.mxu0 0.0
  %540 = vmatpush1.msra.mxu0 0.0
  %541 = vmatprep.subr.mxu0 0.0
  %542 = vmatpush1.msra.mxu0 0.0
  %543 = vmatprep.subr.mxu0 0.0
  %544 = vmatpush1.msra.mxu0 0.0
  %545 = vmatprep.subr.mxu0 0.0
  %546 = vmatpush1.msra.mxu0 0.0
  %547 = vmatprep.subr.mxu0 0.0
  %548 = vmatpush1.msra.mxu0 0.0
  %549 = vmatprep.subr.mxu0 0.0
  %550 = vmatpush1.msra.mxu0 0.0
  %551 = vmatprep.subr.mxu0 0.0
  %552 = vmatpush1.msra.mxu0 0.0
  %553 = vmatprep.subr.mxu0 0.0
  %554 = vmatpush1.msra.mxu0 0.0
  %555 = vmatprep.subr.mxu0 0.0
  %556 = vmatpush1.msra.mxu0 0.0
  %557 = vmatprep.subr.mxu0 0.0
  %558 = vmatpush1.msra.mxu0 0.0
  %559 = vmatprep.subr.mxu0 0.0
  %560 = vmatpush1.msra.mxu0 0.0
  %561 = vmatprep.subr.mxu0 0.0
  %562 = vmatpush1.msra.mxu0 0.0
  %563 = vmatprep.subr.mxu0 0.0
  %564 = vmatpush1.msra.mxu0 0.0
  %565 = vmatprep.subr.mxu0 0.0
  %566 = vmatpush1.msra.mxu0 0.0
  %567 = vmatprep.subr.mxu0 0.0
  %568 = vmatpush1.msra.mxu0 0.0
  %569 = vmatprep.subr.mxu0 0.0
  %570 = vmatpush1.msra.mxu0 0.0
  %571 = vmatprep.subr.mxu0 0.0
  %572 = vmatpush1.msra.mxu0 0.0
  %573 = vmatprep.subr.mxu0 0.0
  %574 = vmatpush1.msra.mxu0 0.0
  %575 = vmatprep.subr.mxu0 0.0
  %576 = vmatpush1.msra.mxu0 0.0
  %577 = vmatprep.subr.mxu0 0.0
  %578 = vmatpush1.msra.mxu0 0.0
  %579 = vmatprep.subr.mxu0 0.0
  %580 = vmatpush1.msra.mxu0 0.0
  %581 = vmatprep.subr.mxu0 0.0
  %582 = vmatpush1.msra.mxu0 0.0
  %583 = vmatprep.subr.mxu0 0.0
  %584 = vmatpush1.msra.mxu0 0.0
  %585 = vmatprep.subr.mxu0 0.0
  %586 = vmatpush1.msra.mxu0 0.0
  %587 = vmatprep.subr.mxu0 0.0
  %588 = vmatpush1.msra.mxu0 0.0
  %589 = vmatprep.subr.mxu0 0.0
  %590 = vmatpush1.msra.mxu0 0.0
  %591 = vmatprep.mubr.f32.mxu0 0.0
  %592 = vmatmul.mubr.f32.gmra.mrb[0].mxu0 %v431
  %v593 = vpop.f32.mrb[0].mxu0
  %v594 = vadd.f32 0.0, %v593
  %v595 = vpop.f32.mrb[0].mxu0
  %596 = vmatprep.mubr.f32.mxu0 0.0
  %597 = vmatmul.mubr.f32.gmra.mrb[0].mxu0 %v434
  %v598 = vpop.f32.mrb[0].mxu0
  %v599 = vadd.f32 0.0, %v598
  %v600 = vpop.f32.mrb[0].mxu0
  %601 = vmatprep.mubr.f32.mxu0 0.0
  %602 = vmatmul.mubr.f32.gmra.mrb[0].mxu0 %v437
  %v603 = vpop.f32.mrb[0].mxu0
  %v604 = vadd.f32 0.0, %v603
  %v605 = vpop.f32.mrb[0].mxu0
  %606 = vmatprep.mubr.f32.mxu0 0.0
  %607 = vmatmul.mubr.f32.gmra.mrb[0].mxu0 %v440
  %v608 = vpop.f32.mrb[0].mxu0
  %v609 = vadd.f32 0.0, %v608
  %v610 = vpop.f32.mrb[0].mxu0
  %611 = vdwg.mxu0
  %v612 = vmul.f32 %v509, %v509
  %v613 = vmul.f32 %v514, %v514
  %v614 = vmul.f32 %v519, %v519
  %v615 = vmul.f32 %v524, %v524
  %v616 = vsub.f32 %v594, %v612
  %v617 = vsub.f32 %v599, %v613
  %v618 = vsub.f32 %v604, %v614
  %v619 = vsub.f32 %v609, %v615
  %v620 = vmax.f32 %v616, 0.0
  %v621 = vmax.f32 %v617, 0.0
  %v622 = vmax.f32 %v618, 0.0
  %v623 = vmax.f32 %v619, 0.0
  %v624 = vld [vmem:[%s2] sm:$0xff]
  %v625 = vld [vmem:[%s2 + $0x8] sm:$0xff]
  %v626 = vld [vmem:[%s2 + $0x10] sm:$0xff]
  %v627 = vld [vmem:[%s2 + $0x18] sm:$0xff]
  %v628 = vadd.f32 %v620, 1e-05
  %v629 = vadd.f32 %v621, 1e-05
  %v630 = vadd.f32 %v622, 1e-05
  %v631 = vadd.f32 %v623, 1e-05
  %v632 = vrsqrt.pop %v628
  %v633 = vrsqrt.pop %v629
  %v634 = vrsqrt.pop %v630
  %v635 = vrsqrt.pop %v631
  %v636 = vmul.f32 %v624, %v632
  %v637 = vmul.f32 %v625, %v633
  %v638 = vmul.f32 %v626, %v634
  %v639 = vmul.f32 %v627, %v635
  %v640 = vld [vmem:[%s3] sm:$0xff]
  %v641 = vld [vmem:[%s3 + $0x8] sm:$0xff]
  %v642 = vld [vmem:[%s3 + $0x10] sm:$0xff]
  %v643 = vld [vmem:[%s3 + $0x18] sm:$0xff]
  %v644 = vmul.f32 %v509, %v636
  %v645 = vmul.f32 %v514, %v637
  %v646 = vmul.f32 %v519, %v638
  %v647 = vmul.f32 %v524, %v639
  %v648 = vsub.f32 %v640, %v644
  %v649 = vsub.f32 %v641, %v645
  %v650 = vsub.f32 %v642, %v646
  %v651 = vsub.f32 %v643, %v647
  %653 = vset.pattern.permute.xlu0 0
  %654 = vperm.xlu0 %653, %v636
  %v655 = vpop.permute.xlu0 %654
  %658 = vset.pattern.permute.xlu0 0
  %659 = vperm.xlu0 %658, %v637
  %v660 = vpop.permute.xlu0 %659
  %663 = vset.pattern.permute.xlu0 0
  %664 = vperm.xlu0 %663, %v638
  %v665 = vpop.permute.xlu0 %664
  %668 = vset.pattern.permute.xlu0 0
  %669 = vperm.xlu0 %668, %v639
  %v670 = vpop.permute.xlu0 %669
  %v672 = vmul.f32 %v353, %v655
  %v673 = vmul.f32 %v354, %v655
  %v674 = vmul.f32 %v355, %v655
  %v675 = vmul.f32 %v356, %v655
  %v676 = vmul.f32 %v357, %v660
  %v677 = vmul.f32 %v358, %v660
  %v678 = vmul.f32 %v359, %v660
  %v679 = vmul.f32 %v360, %v660
  %v680 = vmul.f32 %v361, %v665
  %v681 = vmul.f32 %v362, %v665
  %v682 = vmul.f32 %v363, %v665
  %v683 = vmul.f32 %v364, %v665
  %v684 = vmul.f32 %v365, %v670
  %v685 = vmul.f32 %v366, %v670
  %v686 = vmul.f32 %v367, %v670
  %v687 = vmul.f32 %v368, %v670
  %689 = vset.pattern.permute.xlu0 0
  %690 = vperm.xlu0 %689, %v648
  %v691 = vpop.permute.xlu0 %690
  %694 = vset.pattern.permute.xlu0 0
  %695 = vperm.xlu0 %694, %v649
  %v696 = vpop.permute.xlu0 %695
  %699 = vset.pattern.permute.xlu0 0
  %700 = vperm.xlu0 %699, %v650
  %v701 = vpop.permute.xlu0 %700
  %704 = vset.pattern.permute.xlu0 0
  %705 = vperm.xlu0 %704, %v651
  %v706 = vpop.permute.xlu0 %705
  %v708 = vadd.f32 %v672, %v691
  %v709 = vadd.f32 %v673, %v691
  %v710 = vadd.f32 %v674, %v691
  %v711 = vadd.f32 %v675, %v691
  %v712 = vadd.f32 %v676, %v696
  %v713 = vadd.f32 %v677, %v696
  %v714 = vadd.f32 %v678, %v696
  %v715 = vadd.f32 %v679, %v696
  %v716 = vadd.f32 %v680, %v701
  %v717 = vadd.f32 %v681, %v701
  %v718 = vadd.f32 %v682, %v701
  %v719 = vadd.f32 %v683, %v701
  %v720 = vadd.f32 %v684, %v706
  %v721 = vadd.f32 %v685, %v706
  %v722 = vadd.f32 %v686, %v706
  %v723 = vadd.f32 %v687, %v706
  %v724 = vmax.f32 %v708, 0.0
  %v725 = vmax.f32 %v709, 0.0
  %v726 = vmax.f32 %v710, 0.0
  %v727 = vmax.f32 %v711, 0.0
  %v728 = vmax.f32 %v712, 0.0
  %v729 = vmax.f32 %v713, 0.0
  %v730 = vmax.f32 %v714, 0.0
  %v731 = vmax.f32 %v715, 0.0
  %v732 = vmax.f32 %v716, 0.0
  %v733 = vmax.f32 %v717, 0.0
  %v734 = vmax.f32 %v718, 0.0
  %v735 = vmax.f32 %v719, 0.0
  %v736 = vmax.f32 %v720, 0.0
  %v737 = vmax.f32 %v721, 0.0
  %v738 = vmax.f32 %v722, 0.0
  %v739 = vmax.f32 %v723, 0.0
  %740 = vst [vmem:[%s5] sm:$0xff] %v724
  %741 = vst [vmem:[%s5 + $0x8] sm:$0xff] %v725
  %742 = vst [vmem:[%s5 + $0x10] sm:$0xff] %v726
  %743 = vst [vmem:[%s5 + $0x18] sm:$0xff] %v727
  %744 = vst [vmem:[%s5 + $0x20] sm:$0xff] %v728
  %745 = vst [vmem:[%s5 + $0x28] sm:$0xff] %v729
  %746 = vst [vmem:[%s5 + $0x30] sm:$0xff] %v730
  %747 = vst [vmem:[%s5 + $0x38] sm:$0xff] %v731
  %748 = vst [vmem:[%s5 + $0x40] sm:$0xff] %v732
  %749 = vst [vmem:[%s5 + $0x48] sm:$0xff] %v733
  %750 = vst [vmem:[%s5 + $0x50] sm:$0xff] %v734
  %751 = vst [vmem:[%s5 + $0x58] sm:$0xff] %v735
  %752 = vst [vmem:[%s5 + $0x60] sm:$0xff] %v736
  %753 = vst [vmem:[%s5 + $0x68] sm:$0xff] %v737
  %754 = vst [vmem:[%s5 + $0x70] sm:$0xff] %v738
  %755 = vst [vmem:[%s5 + $0x78] sm:$0xff] %v739
  // Predicated region
  $region22: #{deconv2d_batchnorm_relu.1} parent=0 // pred_check
    _
  $region23: #{deconv2d_batchnorm_relu.1} parent=0 // pred_check_branch
    %757 = sbr.rel (0) target = $region25
  $region24: #{deconv2d_batchnorm_relu.1} parent=0 // pred_region
    _
  $region25: #{deconv2d_batchnorm_relu.1} parent=0 // pred_fallthru
    _
  // Predicated region
  $region26: #{deconv2d_batchnorm_relu.1} parent=0 // pred_check
    _
  $region27: #{deconv2d_batchnorm_relu.1} parent=0 // pred_check_branch
    %759 = sbr.rel (0) target = $region29
  $region28: #{deconv2d_batchnorm_relu.1} parent=0 // pred_region
    _
  $region29: #{deconv2d_batchnorm_relu.1} parent=0 // pred_fallthru
    _

</llo_original>
